<compile_context>
chip_gen: v7x
topology: tpu7x:2x2x1
jax: 0.10.0
libtpu: 0.0.40
codegen_flags: <defaults>
</compile_context>

<pallas_src>
import jax
import jax.numpy as jnp
from jax import lax
from jax.experimental import pallas as pl
from jax.experimental.pallas import tpu as pltpu


def _round_up(x, m):
    return (x + m - 1) // m * m


# ---------------------------------------------------------------------------
# Kernel 1: per-point MLP (conv1/2/3 with folded BN) + global max pool.
# ---------------------------------------------------------------------------
def _make_point_mlp_kernel(tile_n, n_actual, n_pad):
    needs_mask = n_pad != n_actual

    def kernel(x_ref, w1_ref, b1_ref, w2_ref, b2_ref, w3_ref, b3_ref, o_ref):
        t = pl.program_id(1)                                   # N-tile index

        x = x_ref[0]                                           # (tile_n, d_pad) bf16
        # conv1 (k=1) + folded BN1 + ReLU   (output lane-padded 64 -> 128)
        h = jnp.dot(x, w1_ref[...],
                    preferred_element_type=jnp.float32) + b1_ref[...]
        h = jnp.maximum(h, 0.0)
        # conv2 (k=1) + folded BN2 + ReLU
        h = jnp.dot(h.astype(jnp.bfloat16), w2_ref[...],
                    preferred_element_type=jnp.float32) + b2_ref[...]
        h = jnp.maximum(h, 0.0)
        # conv3 (k=1) + folded BN3 + ReLU
        h = jnp.dot(h.astype(jnp.bfloat16), w3_ref[...],
                    preferred_element_type=jnp.float32) + b3_ref[...]
        h = jnp.maximum(h, 0.0)                                # (tile_n, 1024) f32

        if needs_mask:
            # Zero out rows beyond the true point count (ReLU output >= 0, so
            # zeros never win the max over real rows).
            row = t * tile_n + lax.broadcasted_iota(jnp.int32, (tile_n, 1), 0)
            h = jnp.where(row < n_actual, h, 0.0)

        tile_max = jnp.max(h, axis=0, keepdims=True)           # (1, 1024)

        # Running max into the resident per-batch output block.
        @pl.when(t == 0)
        def _():
            o_ref[0] = tile_max

        @pl.when(t > 0)
        def _():
            o_ref[0] = jnp.maximum(o_ref[0], tile_max)

    return kernel


# ---------------------------------------------------------------------------
# Kernel 2: FC head (fc1/fc2 with folded BN, fc3 + identity folded into bias).
# ---------------------------------------------------------------------------
def _fc_head_kernel(g_ref, wf1_ref, bf1_ref, wf2_ref, bf2_ref,
                    wf3_ref, bf3_ref, o_ref):
    g = g_ref[...].astype(jnp.bfloat16)                        # (B, 1024)
    f = jnp.dot(g, wf1_ref[...],
                preferred_element_type=jnp.float32) + bf1_ref[...]
    f = jnp.maximum(f, 0.0)                                    # (B, 512)
    f = jnp.dot(f.astype(jnp.bfloat16), wf2_ref[...],
                preferred_element_type=jnp.float32) + bf2_ref[...]
    f = jnp.maximum(f, 0.0)                                    # (B, 256)
    # fc3 + identity residual (iden folded into bf3); output lane-padded.
    o_ref[...] = (jnp.dot(f.astype(jnp.bfloat16), wf3_ref[...],
                          preferred_element_type=jnp.float32) + bf3_ref[...])


# ---------------------------------------------------------------------------
# Wrapper
# ---------------------------------------------------------------------------
def stnkd_forward(x_ncw, params):
    """x_ncw: (B, input_dim, N) float32, PyTorch NCW layout."""
    (w1, b1, w2, b2, w3, b3, wf1, bf1, wf2, bf2, wf3, bf3) = params
    B, d, N = x_ncw.shape

    d_pad = _round_up(d, 8)
    tile_n = min(512, _round_up(N, 16))      # bounded tile -> fits v7x 64MiB VMEM
    n_pad = _round_up(N, tile_n)
    n_tiles = n_pad // tile_n
    c1 = 128                                 # conv1 output padded 64 -> 128 lanes
    dd = d * d
    dd_pad = _round_up(dd, 128)              # lane-dense final store

    # NCW -> channels-last, pad points/channels, bf16 matmul operands.
    x = jnp.transpose(x_ncw, (0, 2, 1)).astype(jnp.float32)
    x = jnp.pad(x, ((0, 0), (0, n_pad - N), (0, d_pad - d))).astype(jnp.bfloat16)

    # Pad the narrow first layer (K=d -> d_pad, out 64 -> 128); zeros are inert.
    w1p = jnp.zeros((d_pad, c1), jnp.float32).at[:d, :64].set(w1).astype(jnp.bfloat16)
    b1p = jnp.zeros((1, c1), jnp.float32).at[:, :64].set(b1)
    w2p = jnp.zeros((c1, 128), jnp.float32).at[:64, :].set(w2).astype(jnp.bfloat16)
    w3p = w3.astype(jnp.bfloat16)

    flops1 = 2 * B * n_pad * (d_pad * c1 + c1 * 128 + 128 * 1024)
    bytes1 = int(x.size * 2 + (w1p.size + w2p.size + w3p.size) * 2
                 + (b1p.size + b2.size + b3.size) * 4 + B * 1024 * 4)

    pooled = pl.pallas_call(
        _make_point_mlp_kernel(tile_n, N, n_pad),
        out_shape=jax.ShapeDtypeStruct((B, 1, 1024), jnp.float32),
        grid=(B, n_tiles),
        in_specs=[
            pl.BlockSpec((1, tile_n, d_pad), lambda b, t: (b, t, 0)),
            pl.BlockSpec((d_pad, c1), lambda b, t: (0, 0)),
            pl.BlockSpec((1, c1), lambda b, t: (0, 0)),
            pl.BlockSpec((c1, 128), lambda b, t: (0, 0)),
            pl.BlockSpec((1, 128), lambda b, t: (0, 0)),
            pl.BlockSpec((128, 1024), lambda b, t: (0, 0)),
            pl.BlockSpec((1, 1024), lambda b, t: (0, 0)),
        ],
        out_specs=pl.BlockSpec((1, 1, 1024), lambda b, t: (b, 0, 0)),
        compiler_params=pltpu.CompilerParams(
            dimension_semantics=("parallel", "arbitrary")),
        cost_estimate=pl.CostEstimate(flops=flops1, transcendentals=0,
                                      bytes_accessed=bytes1),
    )(x, w1p, b1p, w2p, b2p := b2, w3p, b3)

    pooled = pooled.reshape(B, 1024)

    # FC head params: fold identity into fc3 bias, pad fc3 out to 128 lanes.
    iden = jnp.eye(d, dtype=jnp.float32).reshape(1, dd)
    wf1p = wf1.astype(jnp.bfloat16)
    wf2p = wf2.astype(jnp.bfloat16)
    wf3p = jnp.zeros((256, dd_pad), jnp.float32).at[:, :dd].set(wf3).astype(jnp.bfloat16)
    bf3p = jnp.zeros((1, dd_pad), jnp.float32).at[:, :dd].set(bf3 + iden)

    flops2 = 2 * B * (1024 * 512 + 512 * 256 + 256 * dd_pad)
    bytes2 = int(pooled.size * 4 + (wf1p.size + wf2p.size + wf3p.size) * 2
                 + (bf1.size + bf2.size + bf3p.size) * 4 + B * dd_pad * 4)

    out_padded = pl.pallas_call(
        _fc_head_kernel,
        out_shape=jax.ShapeDtypeStruct((B, dd_pad), jnp.float32),
        grid=(1,),
        in_specs=[
            pl.BlockSpec((B, 1024), lambda i: (0, 0)),
            pl.BlockSpec((1024, 512), lambda i: (0, 0)),
            pl.BlockSpec((1, 512), lambda i: (0, 0)),
            pl.BlockSpec((512, 256), lambda i: (0, 0)),
            pl.BlockSpec((1, 256), lambda i: (0, 0)),
            pl.BlockSpec((256, dd_pad), lambda i: (0, 0)),
            pl.BlockSpec((1, dd_pad), lambda i: (0, 0)),
        ],
        out_specs=pl.BlockSpec((B, dd_pad), lambda i: (0, 0)),
        compiler_params=pltpu.CompilerParams(
            dimension_semantics=("arbitrary",)),
        cost_estimate=pl.CostEstimate(flops=flops2, transcendentals=0,
                                      bytes_accessed=bytes2),
    )(pooled, wf1p, bf1, wf2p, bf2, wf3p, bf3p)

    return out_padded[:, :dd].reshape(B, d, d)


# ---------------------------------------------------------------------------
# Parameter construction (deterministic) with eval-mode BN folding.
# ---------------------------------------------------------------------------
def _fold_bn(w, b, gamma, beta, mean, var, eps=1e-5):
    """Fold eval-mode BatchNorm into the preceding matmul's weight/bias."""
    scale = gamma / jnp.sqrt(var + eps)
    return w * scale[None, :], (b - mean) * scale + beta


def make_params(key, input_dim):
    dims = [(input_dim, 64), (64, 128), (128, 1024),
            (1024, 512), (512, 256), (256, input_dim * input_dim)]
    keys = jax.random.split(key, 36)
    params = []
    ki = 0
    for li, (cin, cout) in enumerate(dims):
        w = jax.random.normal(keys[ki], (cin, cout), jnp.float32) * 0.05; ki += 1
        b = jax.random.normal(keys[ki], (cout,), jnp.float32) * 0.05;      ki += 1
        if li < 5:  # conv1/2/3 and fc1/2 are followed by BatchNorm1d
            gamma = 1.0 + 0.1 * jax.random.normal(keys[ki], (cout,), jnp.float32); ki += 1
            beta = 0.1 * jax.random.normal(keys[ki], (cout,), jnp.float32);        ki += 1
            mean = 0.1 * jax.random.normal(keys[ki], (cout,), jnp.float32);        ki += 1
            var = 0.9 + 0.1 * jnp.abs(jax.random.normal(keys[ki], (cout,), jnp.float32)); ki += 1
            w, b = _fold_bn(w, b, gamma, beta, mean, var)
        params.extend([w, b.reshape(1, cout)])
    return tuple(params)


def stnkd_reference(x_ncw, params):
    """Pure-JAX f32 reference of the same forward pass (for a sanity check)."""
    (w1, b1, w2, b2, w3, b3, wf1, bf1, wf2, bf2, wf3, bf3) = params
    B, d, N = x_ncw.shape
    h = jnp.transpose(x_ncw, (0, 2, 1))
    h = jax.nn.relu(h @ w1 + b1)
    h = jax.nn.relu(h @ w2 + b2)
    h = jax.nn.relu(h @ w3 + b3)
    g = jnp.max(h, axis=1)
    f = jax.nn.relu(g @ wf1 + bf1)
    f = jax.nn.relu(f @ wf2 + bf2)
    out = f @ wf3 + bf3 + jnp.eye(d, dtype=jnp.float32).reshape(1, d * d)
    return out.reshape(B, d, d)


if __name__ == "__main__":
    key = jax.random.PRNGKey(0)
    kx, kp = jax.random.split(key)

    B, input_dim, N = 2, 4, 16       # x: (batch, channels, points), NCW like PyTorch
    x = jax.random.normal(kx, (B, input_dim, N), dtype=jnp.float32)
    params = make_params(kp, input_dim)

    out = stnkd_forward(x, params)
    out = jax.block_until_ready(out)
    assert out.shape == (B, input_dim, input_dim), out.shape
    assert out.dtype == jnp.float32

    ref = stnkd_reference(x, params)
    max_err = float(jnp.max(jnp.abs(out - ref)))
    assert max_err < 1e-1, f"mismatch vs reference: max_err={max_err}"
    print("KERNEL_OK")
</pallas_src>

<mosaic_0001>
module attributes {stable_mosaic.version = 11 : i64} {
  func.func @kernel(%arg0: i32, %arg1: i32, %arg2: memref<1x16x8xbf16, #tpu.memory_space<vmem>>, %arg3: memref<8x128xbf16, #tpu.memory_space<vmem>>, %arg4: memref<1x128xf32, #tpu.memory_space<vmem>>, %arg5: memref<128x128xbf16, #tpu.memory_space<vmem>>, %arg6: memref<1x128xf32, #tpu.memory_space<vmem>>, %arg7: memref<128x1024xbf16, #tpu.memory_space<vmem>>, %arg8: memref<1x1024xf32, #tpu.memory_space<vmem>>, %arg9: memref<1x1x1024xf32, #tpu.memory_space<vmem>>) attributes {dimension_semantics = [#tpu.dimension_semantics<parallel>, #tpu.dimension_semantics<arbitrary>], iteration_bounds = array<i64: 2, 1>, scalar_prefetch = 0 : i64, scratch_operands = 0 : i64, tpu.core_type = #tpu.core_type<tc>, window_params = [{transform_indices = @transform_0, window_bounds = array<i64: 1, 16, 8>}, {pipeline_mode = #tpu.pipeline_mode<synchronous>, transform_indices = @transform_1, window_bounds = array<i64: 8, 128>}, {pipeline_mode = #tpu.pipeline_mode<synchronous>, transform_indices = @transform_2, window_bounds = array<i64: 1, 128>}, {pipeline_mode = #tpu.pipeline_mode<synchronous>, transform_indices = @transform_3, window_bounds = array<i64: 128, 128>}, {pipeline_mode = #tpu.pipeline_mode<synchronous>, transform_indices = @transform_4, window_bounds = array<i64: 1, 128>}, {pipeline_mode = #tpu.pipeline_mode<synchronous>, transform_indices = @transform_5, window_bounds = array<i64: 128, 1024>}, {pipeline_mode = #tpu.pipeline_mode<synchronous>, transform_indices = @transform_6, window_bounds = array<i64: 1, 1024>}, {transform_indices = @transform_7, window_bounds = array<i64: 1, 1, 1024>}]} {
    %c0 = arith.constant 0 : index
    %c0_0 = arith.constant 0 : index
    %c0_1 = arith.constant 0 : index
    %0 = vector.load %arg2[%c0, %c0_0, %c0_1] : memref<1x16x8xbf16, #tpu.memory_space<vmem>>, vector<1x16x8xbf16>
    %1 = vector.shape_cast %0 : vector<1x16x8xbf16> to vector<16x8xbf16>
    %c0_2 = arith.constant 0 : index
    %c0_3 = arith.constant 0 : index
    %2 = vector.load %arg3[%c0_2, %c0_3] : memref<8x128xbf16, #tpu.memory_space<vmem>>, vector<8x128xbf16>
    %cst = arith.constant dense<0.000000e+00> : vector<16x128xf32>
    %3 = tpu.matmul %1, %2, %cst {dimension_numbers = #tpu.dot_dimension_numbers<[1], [0], [0], [1], [0, 0, 1, 1], [], []>} : vector<16x8xbf16>, vector<8x128xbf16>, vector<16x128xf32> -> vector<16x128xf32>
    %c0_4 = arith.constant 0 : index
    %c0_5 = arith.constant 0 : index
    %4 = vector.load %arg4[%c0_4, %c0_5] : memref<1x128xf32, #tpu.memory_space<vmem>>, vector<1x128xf32>
    %5 = vector.broadcast %4 : vector<1x128xf32> to vector<16x128xf32>
    %6 = arith.addf %3, %5 : vector<16x128xf32>
    %cst_6 = arith.constant 0.000000e+00 : f32
    %7 = vector.broadcast %cst_6 : f32 to vector<16x128xf32>
    %8 = arith.maximumf %6, %7 : vector<16x128xf32>
    %9 = arith.truncf %8 : vector<16x128xf32> to vector<16x128xbf16>
    %c0_7 = arith.constant 0 : index
    %c0_8 = arith.constant 0 : index
    %10 = vector.load %arg5[%c0_7, %c0_8] : memref<128x128xbf16, #tpu.memory_space<vmem>>, vector<128x128xbf16>
    %cst_9 = arith.constant dense<0.000000e+00> : vector<16x128xf32>
    %11 = tpu.matmul %9, %10, %cst_9 {dimension_numbers = #tpu.dot_dimension_numbers<[1], [0], [0], [1], [0, 0, 1, 1], [], []>} : vector<16x128xbf16>, vector<128x128xbf16>, vector<16x128xf32> -> vector<16x128xf32>
    %c0_10 = arith.constant 0 : index
    %c0_11 = arith.constant 0 : index
    %12 = vector.load %arg6[%c0_10, %c0_11] : memref<1x128xf32, #tpu.memory_space<vmem>>, vector<1x128xf32>
    %13 = vector.broadcast %12 : vector<1x128xf32> to vector<16x128xf32>
    %14 = arith.addf %11, %13 : vector<16x128xf32>
    %cst_12 = arith.constant 0.000000e+00 : f32
    %15 = vector.broadcast %cst_12 : f32 to vector<16x128xf32>
    %16 = arith.maximumf %14, %15 : vector<16x128xf32>
    %17 = arith.truncf %16 : vector<16x128xf32> to vector<16x128xbf16>
    %c0_13 = arith.constant 0 : index
    %c0_14 = arith.constant 0 : index
    %18 = vector.load %arg7[%c0_13, %c0_14] : memref<128x1024xbf16, #tpu.memory_space<vmem>>, vector<128x1024xbf16>
    %cst_15 = arith.constant dense<0.000000e+00> : vector<16x1024xf32>
    %19 = tpu.matmul %17, %18, %cst_15 {dimension_numbers = #tpu.dot_dimension_numbers<[1], [0], [0], [1], [0, 0, 1, 1], [], []>} : vector<16x128xbf16>, vector<128x1024xbf16>, vector<16x1024xf32> -> vector<16x1024xf32>
    %c0_16 = arith.constant 0 : index
    %c0_17 = arith.constant 0 : index
    %20 = vector.load %arg8[%c0_16, %c0_17] : memref<1x1024xf32, #tpu.memory_space<vmem>>, vector<1x1024xf32>
    %21 = vector.broadcast %20 : vector<1x1024xf32> to vector<16x1024xf32>
    %22 = arith.addf %19, %21 : vector<16x1024xf32>
    %cst_18 = arith.constant 0.000000e+00 : f32
    %23 = vector.broadcast %cst_18 : f32 to vector<16x1024xf32>
    %24 = arith.maximumf %22, %23 : vector<16x1024xf32>
    %cst_19 = arith.constant dense<0xFF800000> : vector<1024xf32>
    %25 = vector.multi_reduction <maximumf>, %24, %cst_19 [0] : vector<16x1024xf32> to vector<1024xf32>
    %26 = vector.shape_cast %25 : vector<1024xf32> to vector<1x1024xf32>
    %c0_i32 = arith.constant 0 : i32
    %27 = arith.cmpi eq, %arg1, %c0_i32 : i32
    %28 = arith.extui %27 : i1 to i32
    %c0_i32_20 = arith.constant 0 : i32
    %29 = arith.cmpi ne, %28, %c0_i32_20 : i32
    scf.if %29 {
      %c0_23 = arith.constant 0 : index
      %c0_24 = arith.constant 0 : index
      %c0_25 = arith.constant 0 : index
      %33 = vector.load %arg9[%c0_23, %c0_24, %c0_25] : memref<1x1x1024xf32, #tpu.memory_space<vmem>>, vector<1x1x1024xf32>
      %34 = vector.shape_cast %33 : vector<1x1x1024xf32> to vector<1x1024xf32>
      %35 = vector.shape_cast %26 : vector<1x1024xf32> to vector<1x1x1024xf32>
      tpu.vector_store %arg9[%c0_23, %c0_24, %c0_25], %35 {strides = array<i32>} : memref<1x1x1024xf32, #tpu.memory_space<vmem>>, vector<1x1x1024xf32>,
    } else {
    }
    %c0_i32_21 = arith.constant 0 : i32
    %30 = arith.cmpi sgt, %arg1, %c0_i32_21 : i32
    %31 = arith.extui %30 : i1 to i32
    %c0_i32_22 = arith.constant 0 : i32
    %32 = arith.cmpi ne, %31, %c0_i32_22 : i32
    scf.if %32 {
      %c0_23 = arith.constant 0 : index
      %c0_24 = arith.constant 0 : index
      %c0_25 = arith.constant 0 : index
      %33 = vector.load %arg9[%c0_23, %c0_24, %c0_25] : memref<1x1x1024xf32, #tpu.memory_space<vmem>>, vector<1x1x1024xf32>
      %34 = vector.shape_cast %33 : vector<1x1x1024xf32> to vector<1x1024xf32>
      %35 = arith.maximumf %34, %26 : vector<1x1024xf32>
      %c0_26 = arith.constant 0 : index
      %c0_27 = arith.constant 0 : index
      %c0_28 = arith.constant 0 : index
      %36 = vector.load %arg9[%c0_26, %c0_27, %c0_28] : memref<1x1x1024xf32, #tpu.memory_space<vmem>>, vector<1x1x1024xf32>
      %37 = vector.shape_cast %36 : vector<1x1x1024xf32> to vector<1x1024xf32>
      %38 = vector.shape_cast %35 : vector<1x1024xf32> to vector<1x1x1024xf32>
      tpu.vector_store %arg9[%c0_26, %c0_27, %c0_28], %38 {strides = array<i32>} : memref<1x1x1024xf32, #tpu.memory_space<vmem>>, vector<1x1x1024xf32>,
    } else {
    }
    return
  }
  func.func @transform_0(%arg0: i32, %arg1: i32) -> (i32, i32, i32) {
    %c0_i32 = arith.constant 0 : i32
    %c0_i32_0 = arith.constant 0 : i32
    return %arg0, %arg1, %c0_i32 : i32, i32, i32
  }
  func.func @transform_1(%arg0: i32, %arg1: i32) -> (i32, i32) {
    %c0_i32 = arith.constant 0 : i32
    %c0_i32_0 = arith.constant 0 : i32
    %c0_i32_1 = arith.constant 0 : i32
    return %c0_i32, %c0_i32_0 : i32, i32
  }
  func.func @transform_2(%arg0: i32, %arg1: i32) -> (i32, i32) {
    %c0_i32 = arith.constant 0 : i32
    %c0_i32_0 = arith.constant 0 : i32
    %c0_i32_1 = arith.constant 0 : i32
    return %c0_i32, %c0_i32_0 : i32, i32
  }
  func.func @transform_3(%arg0: i32, %arg1: i32) -> (i32, i32) {
    %c0_i32 = arith.constant 0 : i32
    %c0_i32_0 = arith.constant 0 : i32
    %c0_i32_1 = arith.constant 0 : i32
    return %c0_i32, %c0_i32_0 : i32, i32
  }
  func.func @transform_4(%arg0: i32, %arg1: i32) -> (i32, i32) {
    %c0_i32 = arith.constant 0 : i32
    %c0_i32_0 = arith.constant 0 : i32
    %c0_i32_1 = arith.constant 0 : i32
    return %c0_i32, %c0_i32_0 : i32, i32
  }
  func.func @transform_5(%arg0: i32, %arg1: i32) -> (i32, i32) {
    %c0_i32 = arith.constant 0 : i32
    %c0_i32_0 = arith.constant 0 : i32
    %c0_i32_1 = arith.constant 0 : i32
    return %c0_i32, %c0_i32_0 : i32, i32
  }
  func.func @transform_6(%arg0: i32, %arg1: i32) -> (i32, i32) {
    %c0_i32 = arith.constant 0 : i32
    %c0_i32_0 = arith.constant 0 : i32
    %c0_i32_1 = arith.constant 0 : i32
    return %c0_i32, %c0_i32_0 : i32, i32
  }
  func.func @transform_7(%arg0: i32, %arg1: i32) -> (i32, i32, i32) {
    %c0_i32 = arith.constant 0 : i32
    %c0_i32_0 = arith.constant 0 : i32
    %c0_i32_1 = arith.constant 0 : i32
    return %arg0, %c0_i32, %c0_i32_0 : i32, i32, i32
  }
}

</mosaic_0001>

<llo_original>
// kernel: tpu_custom_call.1
$region0: #{tpu_custom_call.1}
  #allocation0 [shape = 'u32[]', space=smem, size = 0x4, offset = 0x4, fixed_abs, tag = 'smem constant byte address 0x4 - core index']
  #allocation1 [shape = 'u32[144,128]{1,0:T(1,128)}', space=vmem, size = 0x12000, scoped, tag = 'internal scratch']
  %s0 = inlined_call_operand.vmem [shape: bf16[2,16,8], index: 0, kind: input, shape index: {}]
  %s1 = inlined_call_operand.vmem [shape: bf16[8,128], index: 1, kind: input, shape index: {}]
  %s2 = inlined_call_operand.vmem [shape: f32[1,128], index: 2, kind: input, shape index: {}]
  %s3 = inlined_call_operand.hbm [shape: bf16[128,128], index: 3, kind: input, shape index: {}]
  %s4 = inlined_call_operand.vmem [shape: f32[1,128], index: 4, kind: input, shape index: {}]
  %s5 = inlined_call_operand.hbm [shape: bf16[128,1024], index: 5, kind: input, shape index: {}]
  %s6 = inlined_call_operand.vmem [shape: f32[1,1024], index: 6, kind: input, shape index: {}]
  %s7 = inlined_call_operand.hbm [shape: f32[2,1,1024], index: 7, kind: output, shape index: {}]
  %s8 = sld [smem:[#allocation0]]
  $region77: #{tpu_custom_call.1} parent=0
    _
  %s10 = ssub.s32 1, %s8
  %s11 = scalar_select 0, %s10, %s8
  $region1: #{tpu_custom_call.1} parent=0
    #allocation2 [shape = 'u8[32768]{0}', space=vmem, size = 0x8000, scoped, tag = 'input window, operand 3, single buffered']
    #allocation3 [shape = 's32[2]{0}', space=sflag, size = 0x8, scoped, tag = 'scoped memory for tpu_custom_call.1']
    #allocation4 [shape = 's32[2]{0}', space=sflag, size = 0x8, scoped, tag = 'scoped memory for tpu_custom_call.1']
    #allocation5 [shape = 'u8[262144]{0}', space=vmem, size = 0x40000, scoped, tag = 'input window, operand 5, single buffered']
    #allocation6 [shape = 's32[1]{0}', space=sflag, size = 0x4, scoped, tag = 'scoped memory for tpu_custom_call.1']
    #allocation7 [shape = 'u8[8192]{0}', space=vmem, size = 0x2000, scoped, tag = 'output window, operand 0']
    %12 = vsyncpa [#allocation3], 0
    %13 = vsyncpa [#allocation6], 0
    %14 = vsyncpa [#allocation4], 0
    %s15 = scalar_lea.sflag [#allocation4], 1
    %16 = vsyncpa %s15, 0
    loop: start=0, step=1, limit=4
    $region2: #{tpu_custom_call.1} parent=1 // loop_pre_header
      _
    $region3: #{tpu_custom_call.1} parent=1 // loop_header
      %s18 = sphi 0, %s22
      %p19 = scmp.ge.s32.totalorder %s18, 4
      %s25 = sphi 0, %s37
      %s26 = sphi 0, %s33
      %s27 = sphi 0, %s25
      %s28 = sphi 0, %s26
      %s29 = sphi 0, %s27
      %s30 = sphi 0, %s28
      %s42 = sphi 0, %s44
      %s45 = sphi 0, %s42
      %s46 = sphi 0, %s45
      %s62 = sphi 0, %s46
      %s66 = sphi 0, %s66
      %s68 = sphi 0, %s66
      %s69 = sphi 0, %s68
      %s83 = sphi 0, %s69
      %s87 = sphi 0, %s87
      %s89 = sphi 0, %s87
      %s90 = sphi 0, %s89
      %s104 = sphi 0, %s90
      %s108 = sphi 0, %s108
      %s110 = sphi 0, %s108
      %s111 = sphi 0, %s110
      %s125 = sphi 0, %s111
      %s129 = sphi 0, %s129
      %s131 = sphi 0, %s129
      %s132 = sphi 0, %s131
      %s146 = sphi 0, %s132
      %s150 = sphi 0, %s150
      %s152 = sphi 0, %s150
      %s153 = sphi 0, %s152
      %s167 = sphi 0, %s153
      %s171 = sphi 0, %s171
      %s173 = sphi 0, %s171
      %s174 = sphi 0, %s173
      %s188 = sphi 0, %s174
      %s194 = sphi 0, %s196
      %s197 = sphi 0, %s194
      %s198 = sphi 0, %s197
      %s214 = sphi 0, %s198
    $region4: #{tpu_custom_call.1} parent=1 // loop_header_branch
      %21 = sbr.rel (%p19) target = $region8
    $region5: #{tpu_custom_call.1} parent=1 // loop_body
      %s23 = ssub.s32 %s18, 1
      %s24 = ssub.s32 %s18, 2
      %s31 = sadd.s32 1, %s26
      %p32 = scmp.ge.s32.totalorder %s31, 1
      %s33 = scalar_select %p32, 0, %s31
      %s34 = sadd.s32 1, %s25
      %s35 = scalar_select %p32, %s34, %s25
      %p36 = scmp.ge.s32.totalorder %s35, 2
      %s37 = scalar_select %p36, 0, %s35
      %s38 = ssub.s32 %s25, %s37
      %s39 = ssub.s32 %s26, %s33
      %s40 = sor.u32 %s38, %s39
      %p41 = scmp.eq.s32.totalorder %s40, 0
      %s43 = sadd.s32 %s42, 1
      %s44 = scalar_select %p41, %s42, %s43
      %p47 = pneg %p41
      %p48 = scmp.eq.s32.totalorder %s18, 1
      %p49 = por %p47, %p48
      %p50 = scmp.ne.s32.totalorder %s42, %s45
      %p51 = scmp.eq.s32.totalorder %s18, 0
      %p52 = por %p50, %p51
      %p53 = scmp.ne.s32.totalorder %s42, %s45
      %p54 = scmp.eq.s32.totalorder %s23, 1
      %p55 = por %p53, %p54
      %p56 = scmp.ne.s32.totalorder %s45, %s46
      %p57 = scmp.eq.s32.totalorder %s23, 0
      %p58 = por %p56, %p57
      %p59 = scmp.ne.s32.totalorder %s45, %s46
      %p60 = scmp.eq.s32.totalorder %s24, 1
      %p61 = por %p59, %p60
      %p63 = scmp.ne.s32.totalorder %s46, %s62
      %p64 = scmp.eq.s32.totalorder %s24, 0
      %p65 = por %p63, %p64
      %s67 = sadd.s32 %s66, 1
      %p70 = scmp.eq.s32.totalorder %s18, 1
      %p71 = scmp.ne.s32.totalorder %s66, %s68
      %p72 = scmp.eq.s32.totalorder %s18, 0
      %p73 = por %p71, %p72
      %p74 = scmp.ne.s32.totalorder %s66, %s68
      %p75 = scmp.eq.s32.totalorder %s23, 1
      %p76 = por %p74, %p75
      %p77 = scmp.ne.s32.totalorder %s68, %s69
      %p78 = scmp.eq.s32.totalorder %s23, 0
      %p79 = por %p77, %p78
      %p80 = scmp.ne.s32.totalorder %s68, %s69
      %p81 = scmp.eq.s32.totalorder %s24, 1
      %p82 = por %p80, %p81
      %p84 = scmp.ne.s32.totalorder %s69, %s83
      %p85 = scmp.eq.s32.totalorder %s24, 0
      %p86 = por %p84, %p85
      %s88 = sadd.s32 %s87, 1
      %p91 = scmp.eq.s32.totalorder %s18, 1
      %p92 = scmp.ne.s32.totalorder %s87, %s89
      %p93 = scmp.eq.s32.totalorder %s18, 0
      %p94 = por %p92, %p93
      %p95 = scmp.ne.s32.totalorder %s87, %s89
      %p96 = scmp.eq.s32.totalorder %s23, 1
      %p97 = por %p95, %p96
      %p98 = scmp.ne.s32.totalorder %s89, %s90
      %p99 = scmp.eq.s32.totalorder %s23, 0
      %p100 = por %p98, %p99
      %p101 = scmp.ne.s32.totalorder %s89, %s90
      %p102 = scmp.eq.s32.totalorder %s24, 1
      %p103 = por %p101, %p102
      %p105 = scmp.ne.s32.totalorder %s90, %s104
      %p106 = scmp.eq.s32.totalorder %s24, 0
      %p107 = por %p105, %p106
      %s109 = sadd.s32 %s108, 1
      %p112 = scmp.eq.s32.totalorder %s18, 1
      %p113 = scmp.ne.s32.totalorder %s108, %s110
      %p114 = scmp.eq.s32.totalorder %s18, 0
      %p115 = por %p113, %p114
      %p116 = scmp.ne.s32.totalorder %s108, %s110
      %p117 = scmp.eq.s32.totalorder %s23, 1
      %p118 = por %p116, %p117
      %p119 = scmp.ne.s32.totalorder %s110, %s111
      %p120 = scmp.eq.s32.totalorder %s23, 0
      %p121 = por %p119, %p120
      %p122 = scmp.ne.s32.totalorder %s110, %s111
      %p123 = scmp.eq.s32.totalorder %s24, 1
      %p124 = por %p122, %p123
      %p126 = scmp.ne.s32.totalorder %s111, %s125
      %p127 = scmp.eq.s32.totalorder %s24, 0
      %p128 = por %p126, %p127
      %s130 = sadd.s32 %s129, 1
      %p133 = scmp.eq.s32.totalorder %s18, 1
      %p134 = scmp.ne.s32.totalorder %s129, %s131
      %p135 = scmp.eq.s32.totalorder %s18, 0
      %p136 = por %p134, %p135
      %p137 = scmp.ne.s32.totalorder %s129, %s131
      %p138 = scmp.eq.s32.totalorder %s23, 1
      %p139 = por %p137, %p138
      %p140 = scmp.ne.s32.totalorder %s131, %s132
      %p141 = scmp.eq.s32.totalorder %s23, 0
      %p142 = por %p140, %p141
      %p143 = scmp.ne.s32.totalorder %s131, %s132
      %p144 = scmp.eq.s32.totalorder %s24, 1
      %p145 = por %p143, %p144
      %p147 = scmp.ne.s32.totalorder %s132, %s146
      %p148 = scmp.eq.s32.totalorder %s24, 0
      %p149 = por %p147, %p148
      %s151 = sadd.s32 %s150, 1
      %p154 = scmp.eq.s32.totalorder %s18, 1
      %p155 = scmp.ne.s32.totalorder %s150, %s152
      %p156 = scmp.eq.s32.totalorder %s18, 0
      %p157 = por %p155, %p156
      %p158 = scmp.ne.s32.totalorder %s150, %s152
      %p159 = scmp.eq.s32.totalorder %s23, 1
      %p160 = por %p158, %p159
      %p161 = scmp.ne.s32.totalorder %s152, %s153
      %p162 = scmp.eq.s32.totalorder %s23, 0
      %p163 = por %p161, %p162
      %p164 = scmp.ne.s32.totalorder %s152, %s153
      %p165 = scmp.eq.s32.totalorder %s24, 1
      %p166 = por %p164, %p165
      %p168 = scmp.ne.s32.totalorder %s153, %s167
      %p169 = scmp.eq.s32.totalorder %s24, 0
      %p170 = por %p168, %p169
      %s172 = sadd.s32 %s171, 1
      %p175 = scmp.eq.s32.totalorder %s18, 1
      %p176 = scmp.ne.s32.totalorder %s171, %s173
      %p177 = scmp.eq.s32.totalorder %s18, 0
      %p178 = por %p176, %p177
      %p179 = scmp.ne.s32.totalorder %s171, %s173
      %p180 = scmp.eq.s32.totalorder %s23, 1
      %p181 = por %p179, %p180
      %p182 = scmp.ne.s32.totalorder %s173, %s174
      %p183 = scmp.eq.s32.totalorder %s23, 0
      %p184 = por %p182, %p183
      %p185 = scmp.ne.s32.totalorder %s173, %s174
      %p186 = scmp.eq.s32.totalorder %s24, 1
      %p187 = por %p185, %p186
      %p189 = scmp.ne.s32.totalorder %s174, %s188
      %p190 = scmp.eq.s32.totalorder %s24, 0
      %p191 = por %p189, %p190
      %s192 = ssub.s32 %s25, %s37
      %p193 = scmp.eq.s32.totalorder %s192, 0
      %s195 = sadd.s32 %s194, 1
      %s196 = scalar_select %p193, %s194, %s195
      %p199 = pneg %p193
      %p200 = scmp.eq.s32.totalorder %s18, 1
      %p201 = por %p199, %p200
      %p202 = scmp.ne.s32.totalorder %s194, %s197
      %p203 = scmp.eq.s32.totalorder %s18, 0
      %p204 = por %p202, %p203
      %p205 = scmp.ne.s32.totalorder %s194, %s197
      %p206 = scmp.eq.s32.totalorder %s23, 1
      %p207 = por %p205, %p206
      %p208 = scmp.ne.s32.totalorder %s197, %s198
      %p209 = scmp.eq.s32.totalorder %s23, 0
      %p210 = por %p208, %p209
      %p211 = scmp.ne.s32.totalorder %s197, %s198
      %p212 = scmp.eq.s32.totalorder %s24, 1
      %p213 = por %p211, %p212
      %p215 = scmp.ne.s32.totalorder %s198, %s214
      %p216 = scmp.eq.s32.totalorder %s24, 0
      %p217 = por %p215, %p216
      %p218 = scmp.le.s32.totalorder 1, %s18
      %p219 = scmp.lt.s32.totalorder %s18, 3
      %p220 = pnand %p218, %p219
      %p221 = pneg %p220
      // Predicated region
      $region9: #{tpu_custom_call.1} parent=5 // pred_check
        _
      $region10: #{tpu_custom_call.1} parent=5 // pred_check_branch
        %223 = sbr.rel (%p220) target = $region12
      $region11: #{tpu_custom_call.1} parent=5 // pred_region
        %s224 = ssub.s32 %s18, 1
        // Predicated region
        $region13: #{tpu_custom_call.1} parent=11 // pred_check
          %p225 = pneg %p79
        $region14: #{tpu_custom_call.1} parent=11 // pred_check_branch
          %227 = sbr.rel (%p225) target = $region16
        $region15: #{tpu_custom_call.1} parent=11 // pred_region
          _
        $region16: #{tpu_custom_call.1} parent=11 // pred_fallthru
          _
        // Predicated region
        $region17: #{tpu_custom_call.1} parent=11 // pred_check
          %p228 = pneg %p100
        $region18: #{tpu_custom_call.1} parent=11 // pred_check_branch
          %230 = sbr.rel (%p228) target = $region20
        $region19: #{tpu_custom_call.1} parent=11 // pred_region
          _
        $region20: #{tpu_custom_call.1} parent=11 // pred_fallthru
          _
        // Predicated region
        $region21: #{tpu_custom_call.1} parent=11 // pred_check
          %p231 = pneg %p121
        $region22: #{tpu_custom_call.1} parent=11 // pred_check_branch
          %233 = sbr.rel (%p231) target = $region24
        $region23: #{tpu_custom_call.1} parent=11 // pred_region
          %s235 = ssub.s32 1024, 1024
          %236 = vsyncadd [#allocation3], %s235
          %s237 = sshll.u32 [#allocation2], 4
          %s238 = int_to_ptr.vmem [resolvable:$true] %s237
          %243 = dma.hbm_to_vmem [thread:$0]  %s3, 1024, %s238, [#allocation3], 64, 64, 4
        $region24: #{tpu_custom_call.1} parent=11 // pred_fallthru
          _
        // Predicated region
        $region25: #{tpu_custom_call.1} parent=11 // pred_check
          %p244 = pneg %p142
        $region26: #{tpu_custom_call.1} parent=11 // pred_check_branch
          %246 = sbr.rel (%p244) target = $region28
        $region27: #{tpu_custom_call.1} parent=11 // pred_region
          _
        $region28: #{tpu_custom_call.1} parent=11 // pred_fallthru
          _
        // Predicated region
        $region29: #{tpu_custom_call.1} parent=11 // pred_check
          %p247 = pneg %p163
        $region30: #{tpu_custom_call.1} parent=11 // pred_check_branch
          %249 = sbr.rel (%p247) target = $region32
        $region31: #{tpu_custom_call.1} parent=11 // pred_region
          %s251 = ssub.s32 8192, 8192
          %252 = vsyncadd [#allocation6], %s251
          %s253 = sshll.u32 [#allocation5], 4
          %s254 = int_to_ptr.vmem [resolvable:$true] %s253
          %259 = dma.hbm_to_vmem [thread:$0]  %s5, 8192, %s254, [#allocation6], 512, 512, 32
        $region32: #{tpu_custom_call.1} parent=11 // pred_fallthru
          _
        // Predicated region
        $region33: #{tpu_custom_call.1} parent=11 // pred_check
          %p260 = pneg %p184
        $region34: #{tpu_custom_call.1} parent=11 // pred_check_branch
          %262 = sbr.rel (%p260) target = $region36
        $region35: #{tpu_custom_call.1} parent=11 // pred_region
          _
        $region36: #{tpu_custom_call.1} parent=11 // pred_fallthru
          _
      $region12: #{tpu_custom_call.1} parent=5 // pred_fallthru
        _
      %p263 = scmp.lt.s32.totalorder %s18, 2
      // Predicated region
      $region37: #{tpu_custom_call.1} parent=5 // pred_check
        %p264 = pneg %p263
      $region38: #{tpu_custom_call.1} parent=5 // pred_check_branch
        %266 = sbr.rel (%p264) target = $region40
      $region39: #{tpu_custom_call.1} parent=5 // pred_region
        // Predicated region
        $region41: #{tpu_custom_call.1} parent=39 // pred_check
          %p267 = pneg %p52
        $region42: #{tpu_custom_call.1} parent=39 // pred_check_branch
          %269 = sbr.rel (%p267) target = $region44
        $region43: #{tpu_custom_call.1} parent=39 // pred_region
          %s270 = smul.u32 2, %s26
          %p271 = scmp.lt.s32.totalorder %s25, 1
          %s272 = scalar_select %p271, %s25, 1
          %p273 = scmp.lt.s32.totalorder %s270, 1
          %s274 = scalar_select %p273, %s270, 1
          %s275 = smul.addr %s272, 2
          %s276 = sadd.s32 %s274, %s275
          %s277 = smul.addr %s276, 4
          %s278 = scalar_lea.vmem %s0, %s277
          %s279 = smul.u32 2, %s26
        $region44: #{tpu_custom_call.1} parent=39 // pred_fallthru
          _
      $region40: #{tpu_custom_call.1} parent=5 // pred_fallthru
        _
      %p280 = scmp.le.s32.totalorder 1, %s18
      %p281 = scmp.lt.s32.totalorder %s18, 3
      %p282 = pnand %p280, %p281
      %p283 = pneg %p282
      // Predicated region
      $region45: #{tpu_custom_call.1} parent=5 // pred_check
        _
      $region46: #{tpu_custom_call.1} parent=5 // pred_check_branch
        %285 = sbr.rel (%p282) target = $region48
      $region47: #{tpu_custom_call.1} parent=5 // pred_region
        %s286 = ssub.s32 %s18, 1
        // Predicated region
        $region49: #{tpu_custom_call.1} parent=47 // pred_check
          %p287 = pneg %p121
        $region50: #{tpu_custom_call.1} parent=47 // pred_check_branch
          %289 = sbr.rel (%p287) target = $region52
        $region51: #{tpu_custom_call.1} parent=47 // pred_region
          %290 = dma.done [#allocation3], 1024
        $region52: #{tpu_custom_call.1} parent=47 // pred_fallthru
          _
        // Predicated region
        $region53: #{tpu_custom_call.1} parent=47 // pred_check
          %p291 = pneg %p163
        $region54: #{tpu_custom_call.1} parent=47 // pred_check_branch
          %293 = sbr.rel (%p291) target = $region56
        $region55: #{tpu_custom_call.1} parent=47 // pred_region
          %294 = dma.done [#allocation6], 8192
        $region56: #{tpu_custom_call.1} parent=47 // pred_fallthru
          _
        %s295 = smul.u32 2, %s28
        %p296 = scmp.lt.s32.totalorder %s27, 1
        %s297 = scalar_select %p296, %s27, 1
        %p298 = scmp.lt.s32.totalorder %s295, 1
        %s299 = scalar_select %p298, %s295, 1
        %s300 = smul.addr %s297, 2
        %s301 = sadd.s32 %s299, %s300
        %s302 = smul.addr %s301, 4
        %s303 = scalar_lea.vmem %s0, %s302
        %p304 = pneg %p58
        %p305 = pneg %p55
        %p306 = pneg %p79
        %p307 = pneg %p76
        %p308 = pneg %p100
        %p309 = pneg %p97
        %p310 = pneg %p121
        %p311 = pneg %p118
        %p312 = pneg %p142
        %p313 = pneg %p139
        %p314 = pneg %p163
        %p315 = pneg %p160
        %p316 = pneg %p184
        %p317 = pneg %p181
        %p318 = pneg %p210
        %p319 = pneg %p207
        %s320 = sand.u32 %s197, 1
        %s321 = scalar_lea.sflag [#allocation4], %s320
        %s322 = sand.u32 %s197, 1
        %s323 = smul.addr %s322, 8
        %s324 = scalar_lea.vmem [#allocation7], %s323
        %s325 = smul.u32 2, %s28
        %p326 = scmp.lt.s32.totalorder %s27, 1
        %s327 = scalar_select %p326, %s27, 1
        %p328 = scmp.lt.s32.totalorder %s325, 1
        %s329 = scalar_select %p328, %s325, 1
        %s330 = smul.addr %s327, 2
        %s331 = sadd.s32 %s329, %s330
        %s332 = smul.addr %s331, 4
        %s333 = scalar_lea.vmem %s0, %s332
        %s334 = smul.u32 2, %s28
        %v336 = vld [vmem:[%s333] sm:$0xf]
        %v337 = vld [vmem:[%s333 + $0x4] sm:$0xf]
        %v338 = vld [vmem:[%s1] sm:$0xf]
        %v339 = vld [vmem:[%s2] sm:$0x1]
        %v341 = vlaneseq
        %v342 = vshrl.u32 %v341, 7
        %v343 = vsub.s32 0, %v342
        %v344 = vrot.slane %v339, %v343
        %v348 = vunpack.c.l.b16 %v336
        %v349 = vunpack.c.l.b16 %v337
        %v350 = vpack.c.b16 %v349, %v348
        %vm351 = vcmask 64512
        %v353 = vsel %vm351, %v350, 0
        %vm355 = vcmask 1043456
        %v357 = vsel %vm355, %v338, 0
        %359 = vmatprep.subr.bf16.mxu0 0
        %360 = vmatpush1.bf16.msra.mxu0 %v357
        %361 = vmatprep.subr.bf16.mxu0 0
        %362 = vmatpush1.bf16.msra.mxu0 0
        %363 = vmatprep.subr.bf16.mxu0 0
        %364 = vmatpush1.bf16.msra.mxu0 0
        %365 = vmatprep.subr.bf16.mxu0 0
        %366 = vmatpush1.bf16.msra.mxu0 0
        %367 = vmatprep.subr.bf16.mxu0 0
        %368 = vmatpush1.bf16.msra.mxu0 0
        %369 = vmatprep.subr.bf16.mxu0 0
        %370 = vmatpush1.bf16.msra.mxu0 0
        %371 = vmatprep.subr.bf16.mxu0 0
        %372 = vmatpush1.bf16.msra.mxu0 0
        %373 = vmatprep.subr.bf16.mxu0 0
        %374 = vmatpush1.bf16.msra.mxu0 0
        %375 = vmatprep.subr.bf16.mxu0 0
        %376 = vmatpush1.bf16.msra.mxu0 0
        %377 = vmatprep.subr.bf16.mxu0 0
        %378 = vmatpush1.bf16.msra.mxu0 0
        %379 = vmatprep.subr.bf16.mxu0 0
        %380 = vmatpush1.bf16.msra.mxu0 0
        %381 = vmatprep.subr.bf16.mxu0 0
        %382 = vmatpush1.bf16.msra.mxu0 0
        %383 = vmatprep.subr.bf16.mxu0 0
        %384 = vmatpush1.bf16.msra.mxu0 0
        %385 = vmatprep.subr.bf16.mxu0 0
        %386 = vmatpush1.bf16.msra.mxu0 0
        %387 = vmatprep.subr.bf16.mxu0 0
        %388 = vmatpush1.bf16.msra.mxu0 0
        %389 = vmatprep.subr.bf16.mxu0 0
        %390 = vmatpush1.bf16.msra.mxu0 0
        %391 = vmatprep.mubr.bf16.mxu0 0
        %392 = vmatmul.mubr.bf16.gmra.mrb[0].mxu0 %v353
        %v393 = vpop.f32.mrb[0].mxu0
        %v394 = vadd.f32 %v344, %v393
        %v395 = vpop.f32.mrb[0].mxu0
        %v396 = vpop.f32.mrb[0].mxu0
        %v397 = vadd.f32 %v344, %v396
        %v398 = vpop.f32.mrb[0].mxu0
        %399 = vdwg.mxu0
        %v400 = vmax.f32 %v394, 0.0
        %v401 = vmax.f32 %v397, 0.0
        %v402 = vpack.c.bf16 %v401, %v400
        %v403 = vld [vmem:[#allocation2] sm:$0xf]
        %v404 = vld [vmem:[#allocation2 + $0x4] sm:$0xf]
        %v405 = vld [vmem:[#allocation2 + $0x8] sm:$0xf]
        %v406 = vld [vmem:[#allocation2 + $0xc] sm:$0xf]
        %v407 = vld [vmem:[#allocation2 + $0x10] sm:$0xf]
        %v408 = vld [vmem:[#allocation2 + $0x14] sm:$0xf]
        %v409 = vld [vmem:[#allocation2 + $0x18] sm:$0xf]
        %v410 = vld [vmem:[#allocation2 + $0x1c] sm:$0xf]
        %v411 = vld [vmem:[#allocation2 + $0x20] sm:$0xf]
        %v412 = vld [vmem:[#allocation2 + $0x24] sm:$0xf]
        %v413 = vld [vmem:[#allocation2 + $0x28] sm:$0xf]
        %v414 = vld [vmem:[#allocation2 + $0x2c] sm:$0xf]
        %v415 = vld [vmem:[#allocation2 + $0x30] sm:$0xf]
        %v416 = vld [vmem:[#allocation2 + $0x34] sm:$0xf]
        %v417 = vld [vmem:[#allocation2 + $0x38] sm:$0xf]
        %v418 = vld [vmem:[#allocation2 + $0x3c] sm:$0xf]
        %v419 = vld [vmem:[%s4] sm:$0x1]
        %v421 = vlaneseq
        %v422 = vshrl.u32 %v421, 7
        %v423 = vsub.s32 0, %v422
        %v424 = vrot.slane %v419, %v423
        %v442 = vunpack.c.l.b16 %v403
        %v443 = vunpack.c.l.b16 %v404
        %v444 = vunpack.c.l.b16 %v405
        %v445 = vunpack.c.l.b16 %v406
        %v446 = vunpack.c.l.b16 %v407
        %v447 = vunpack.c.l.b16 %v408
        %v448 = vunpack.c.l.b16 %v409
        %v449 = vunpack.c.l.b16 %v410
        %v450 = vunpack.c.l.b16 %v411
        %v451 = vunpack.c.l.b16 %v412
        %v452 = vunpack.c.l.b16 %v413
        %v453 = vunpack.c.l.b16 %v414
        %v454 = vunpack.c.l.b16 %v415
        %v455 = vunpack.c.l.b16 %v416
        %v456 = vunpack.c.l.b16 %v417
        %v457 = vunpack.c.l.b16 %v418
        %v458 = vpack.c.b16 %v443, %v442
        %v459 = vpack.c.b16 %v445, %v444
        %v460 = vpack.c.b16 %v447, %v446
        %v461 = vpack.c.b16 %v449, %v448
        %v462 = vpack.c.b16 %v451, %v450
        %v463 = vpack.c.b16 %v453, %v452
        %v464 = vpack.c.b16 %v455, %v454
        %v465 = vpack.c.b16 %v457, %v456
        %474 = vmatprep.subr.bf16.mxu0 0
        %475 = vmatpush1.bf16.msra.mxu0 %v458
        %476 = vmatprep.subr.bf16.mxu0 0
        %477 = vmatpush1.bf16.msra.mxu0 %v459
        %478 = vmatprep.subr.bf16.mxu0 0
        %479 = vmatpush1.bf16.msra.mxu0 %v460
        %480 = vmatprep.subr.bf16.mxu0 0
        %481 = vmatpush1.bf16.msra.mxu0 %v461
        %482 = vmatprep.subr.bf16.mxu0 0
        %483 = vmatpush1.bf16.msra.mxu0 %v462
        %484 = vmatprep.subr.bf16.mxu0 0
        %485 = vmatpush1.bf16.msra.mxu0 %v463
        %486 = vmatprep.subr.bf16.mxu0 0
        %487 = vmatpush1.bf16.msra.mxu0 %v464
        %488 = vmatprep.subr.bf16.mxu0 0
        %489 = vmatpush1.bf16.msra.mxu0 %v465
        %490 = vmatprep.subr.bf16.mxu0 0
        %491 = vmatpush1.bf16.msra.mxu0 0
        %492 = vmatprep.subr.bf16.mxu0 0
        %493 = vmatpush1.bf16.msra.mxu0 0
        %494 = vmatprep.subr.bf16.mxu0 0
        %495 = vmatpush1.bf16.msra.mxu0 0
        %496 = vmatprep.subr.bf16.mxu0 0
        %497 = vmatpush1.bf16.msra.mxu0 0
        %498 = vmatprep.subr.bf16.mxu0 0
        %499 = vmatpush1.bf16.msra.mxu0 0
        %500 = vmatprep.subr.bf16.mxu0 0
        %501 = vmatpush1.bf16.msra.mxu0 0
        %502 = vmatprep.subr.bf16.mxu0 0
        %503 = vmatpush1.bf16.msra.mxu0 0
        %504 = vmatprep.subr.bf16.mxu0 0
        %505 = vmatpush1.bf16.msra.mxu0 0
        %506 = vmatprep.mubr.bf16.mxu0 0
        %507 = vmatmul.mubr.bf16.gmra.mrb[0].mxu0 %v402
        %v508 = vpop.f32.mrb[0].mxu0
        %v509 = vadd.f32 %v424, %v508
        %v510 = vpop.f32.mrb[0].mxu0
        %v511 = vpop.f32.mrb[0].mxu0
        %v512 = vadd.f32 %v424, %v511
        %v513 = vpop.f32.mrb[0].mxu0
        %514 = vdwg.mxu0
        %v515 = vmax.f32 %v509, 0.0
        %v516 = vmax.f32 %v512, 0.0
        %v517 = vpack.c.bf16 %v516, %v515
        %v518 = vld [vmem:[#allocation5] sm:$0xff]
        %v519 = vld [vmem:[#allocation5 + $0x8] sm:$0xff]
        %v520 = vld [vmem:[#allocation5 + $0x10] sm:$0xff]
        %v521 = vld [vmem:[#allocation5 + $0x18] sm:$0xff]
        %v522 = vld [vmem:[#allocation5 + $0x20] sm:$0xff]
        %v523 = vld [vmem:[#allocation5 + $0x28] sm:$0xff]
        %v524 = vld [vmem:[#allocation5 + $0x30] sm:$0xff]
        %v525 = vld [vmem:[#allocation5 + $0x38] sm:$0xff]
        %v526 = vld [vmem:[#allocation5 + $0x40] sm:$0xff]
        %v527 = vld [vmem:[#allocation5 + $0x48] sm:$0xff]
        %v528 = vld [vmem:[#allocation5 + $0x50] sm:$0xff]
        %v529 = vld [vmem:[#allocation5 + $0x58] sm:$0xff]
        %v530 = vld [vmem:[#allocation5 + $0x60] sm:$0xff]
        %v531 = vld [vmem:[#allocation5 + $0x68] sm:$0xff]
        %v532 = vld [vmem:[#allocation5 + $0x70] sm:$0xff]
        %v533 = vld [vmem:[#allocation5 + $0x78] sm:$0xff]
        %v534 = vld [vmem:[#allocation5 + $0x80] sm:$0xff]
        %v535 = vld [vmem:[#allocation5 + $0x88] sm:$0xff]
        %v536 = vld [vmem:[#allocation5 + $0x90] sm:$0xff]
        %v537 = vld [vmem:[#allocation5 + $0x98] sm:$0xff]
        %v538 = vld [vmem:[#allocation5 + $0xa0] sm:$0xff]
        %v539 = vld [vmem:[#allocation5 + $0xa8] sm:$0xff]
        %v540 = vld [vmem:[#allocation5 + $0xb0] sm:$0xff]
        %v541 = vld [vmem:[#allocation5 + $0xb8] sm:$0xff]
        %v542 = vld [vmem:[#allocation5 + $0xc0] sm:$0xff]
        %v543 = vld [vmem:[#allocation5 + $0xc8] sm:$0xff]
        %v544 = vld [vmem:[#allocation5 + $0xd0] sm:$0xff]
        %v545 = vld [vmem:[#allocation5 + $0xd8] sm:$0xff]
        %v546 = vld [vmem:[#allocation5 + $0xe0] sm:$0xff]
        %v547 = vld [vmem:[#allocation5 + $0xe8] sm:$0xff]
        %v548 = vld [vmem:[#allocation5 + $0xf0] sm:$0xff]
        %v549 = vld [vmem:[#allocation5 + $0xf8] sm:$0xff]
        %v550 = vld [vmem:[#allocation5 + $0x100] sm:$0xff]
        %v551 = vld [vmem:[#allocation5 + $0x108] sm:$0xff]
        %v552 = vld [vmem:[#allocation5 + $0x110] sm:$0xff]
        %v553 = vld [vmem:[#allocation5 + $0x118] sm:$0xff]
        %v554 = vld [vmem:[#allocation5 + $0x120] sm:$0xff]
        %v555 = vld [vmem:[#allocation5 + $0x128] sm:$0xff]
        %v556 = vld [vmem:[#allocation5 + $0x130] sm:$0xff]
        %v557 = vld [vmem:[#allocation5 + $0x138] sm:$0xff]
        %v558 = vld [vmem:[#allocation5 + $0x140] sm:$0xff]
        %v559 = vld [vmem:[#allocation5 + $0x148] sm:$0xff]
        %v560 = vld [vmem:[#allocation5 + $0x150] sm:$0xff]
        %v561 = vld [vmem:[#allocation5 + $0x158] sm:$0xff]
        %v562 = vld [vmem:[#allocation5 + $0x160] sm:$0xff]
        %v563 = vld [vmem:[#allocation5 + $0x168] sm:$0xff]
        %v564 = vld [vmem:[#allocation5 + $0x170] sm:$0xff]
        %v565 = vld [vmem:[#allocation5 + $0x178] sm:$0xff]
        %v566 = vld [vmem:[#allocation5 + $0x180] sm:$0xff]
        %v567 = vld [vmem:[#allocation5 + $0x188] sm:$0xff]
        %v568 = vld [vmem:[#allocation5 + $0x190] sm:$0xff]
        %v569 = vld [vmem:[#allocation5 + $0x198] sm:$0xff]
        %v570 = vld [vmem:[#allocation5 + $0x1a0] sm:$0xff]
        %v571 = vld [vmem:[#allocation5 + $0x1a8] sm:$0xff]
        %v572 = vld [vmem:[#allocation5 + $0x1b0] sm:$0xff]
        %v573 = vld [vmem:[#allocation5 + $0x1b8] sm:$0xff]
        %v574 = vld [vmem:[#allocation5 + $0x1c0] sm:$0xff]
        %v575 = vld [vmem:[#allocation5 + $0x1c8] sm:$0xff]
        %v576 = vld [vmem:[#allocation5 + $0x1d0] sm:$0xff]
        %v577 = vld [vmem:[#allocation5 + $0x1d8] sm:$0xff]
        %v578 = vld [vmem:[#allocation5 + $0x1e0] sm:$0xff]
        %v579 = vld [vmem:[#allocation5 + $0x1e8] sm:$0xff]
        %v580 = vld [vmem:[#allocation5 + $0x1f0] sm:$0xff]
        %v581 = vld [vmem:[#allocation5 + $0x1f8] sm:$0xff]
        %v582 = vld [vmem:[%s6] sm:$0xff]
        %v584 = vlaneseq
        %v585 = vshrl.u32 %v584, 7
        %v586 = vsub.s32 0, %v585
        %v587 = vrot.slane %v582, %v586
        %v588 = vlaneseq
        %v589 = vshrl.u32 %v588, 7
        %v590 = vsub.s32 1, %v589
        %v591 = vrot.slane %v582, %v590
        %v592 = vlaneseq
        %v593 = vshrl.u32 %v592, 7
        %v594 = vsub.s32 2, %v593
        %v595 = vrot.slane %v582, %v594
        %v596 = vlaneseq
        %v597 = vshrl.u32 %v596, 7
        %v598 = vsub.s32 3, %v597
        %v599 = vrot.slane %v582, %v598
        %v600 = vlaneseq
        %v601 = vshrl.u32 %v600, 7
        %v602 = vsub.s32 4, %v601
        %v603 = vrot.slane %v582, %v602
        %v604 = vlaneseq
        %v605 = vshrl.u32 %v604, 7
        %v606 = vsub.s32 5, %v605
        %v607 = vrot.slane %v582, %v606
        %v608 = vlaneseq
        %v609 = vshrl.u32 %v608, 7
        %v610 = vsub.s32 6, %v609
        %v611 = vrot.slane %v582, %v610
        %v612 = vlaneseq
        %v613 = vshrl.u32 %v612, 7
        %v614 = vsub.s32 7, %v613
        %v615 = vrot.slane %v582, %v614
        %v688 = vunpack.c.l.b16 %v518
        %v689 = vunpack.c.h.b16 %v518
        %v690 = vunpack.c.l.b16 %v519
        %v691 = vunpack.c.h.b16 %v519
        %v692 = vunpack.c.l.b16 %v520
        %v693 = vunpack.c.h.b16 %v520
        %v694 = vunpack.c.l.b16 %v521
        %v695 = vunpack.c.h.b16 %v521
        %v696 = vunpack.c.l.b16 %v522
        %v697 = vunpack.c.h.b16 %v522
        %v698 = vunpack.c.l.b16 %v523
        %v699 = vunpack.c.h.b16 %v523
        %v700 = vunpack.c.l.b16 %v524
        %v701 = vunpack.c.h.b16 %v524
        %v702 = vunpack.c.l.b16 %v525
        %v703 = vunpack.c.h.b16 %v525
        %v704 = vunpack.c.l.b16 %v526
        %v705 = vunpack.c.h.b16 %v526
        %v706 = vunpack.c.l.b16 %v527
        %v707 = vunpack.c.h.b16 %v527
        %v708 = vunpack.c.l.b16 %v528
        %v709 = vunpack.c.h.b16 %v528
        %v710 = vunpack.c.l.b16 %v529
        %v711 = vunpack.c.h.b16 %v529
        %v712 = vunpack.c.l.b16 %v530
        %v713 = vunpack.c.h.b16 %v530
        %v714 = vunpack.c.l.b16 %v531
        %v715 = vunpack.c.h.b16 %v531
        %v716 = vunpack.c.l.b16 %v532
        %v717 = vunpack.c.h.b16 %v532
        %v718 = vunpack.c.l.b16 %v533
        %v719 = vunpack.c.h.b16 %v533
        %v720 = vunpack.c.l.b16 %v534
        %v721 = vunpack.c.h.b16 %v534
        %v722 = vunpack.c.l.b16 %v535
        %v723 = vunpack.c.h.b16 %v535
        %v724 = vunpack.c.l.b16 %v536
        %v725 = vunpack.c.h.b16 %v536
        %v726 = vunpack.c.l.b16 %v537
        %v727 = vunpack.c.h.b16 %v537
        %v728 = vunpack.c.l.b16 %v538
        %v729 = vunpack.c.h.b16 %v538
        %v730 = vunpack.c.l.b16 %v539
        %v731 = vunpack.c.h.b16 %v539
        %v732 = vunpack.c.l.b16 %v540
        %v733 = vunpack.c.h.b16 %v540
        %v734 = vunpack.c.l.b16 %v541
        %v735 = vunpack.c.h.b16 %v541
        %v736 = vunpack.c.l.b16 %v542
        %v737 = vunpack.c.h.b16 %v542
        %v738 = vunpack.c.l.b16 %v543
        %v739 = vunpack.c.h.b16 %v543
        %v740 = vunpack.c.l.b16 %v544
        %v741 = vunpack.c.h.b16 %v544
        %v742 = vunpack.c.l.b16 %v545
        %v743 = vunpack.c.h.b16 %v545
        %v744 = vunpack.c.l.b16 %v546
        %v745 = vunpack.c.h.b16 %v546
        %v746 = vunpack.c.l.b16 %v547
        %v747 = vunpack.c.h.b16 %v547
        %v748 = vunpack.c.l.b16 %v548
        %v749 = vunpack.c.h.b16 %v548
        %v750 = vunpack.c.l.b16 %v549
        %v751 = vunpack.c.h.b16 %v549
        %v752 = vunpack.c.l.b16 %v550
        %v753 = vunpack.c.h.b16 %v550
        %v754 = vunpack.c.l.b16 %v551
        %v755 = vunpack.c.h.b16 %v551
        %v756 = vunpack.c.l.b16 %v552
        %v757 = vunpack.c.h.b16 %v552
        %v758 = vunpack.c.l.b16 %v553
        %v759 = vunpack.c.h.b16 %v553
        %v760 = vunpack.c.l.b16 %v554
        %v761 = vunpack.c.h.b16 %v554
        %v762 = vunpack.c.l.b16 %v555
        %v763 = vunpack.c.h.b16 %v555
        %v764 = vunpack.c.l.b16 %v556
        %v765 = vunpack.c.h.b16 %v556
        %v766 = vunpack.c.l.b16 %v557
        %v767 = vunpack.c.h.b16 %v557
        %v768 = vunpack.c.l.b16 %v558
        %v769 = vunpack.c.h.b16 %v558
        %v770 = vunpack.c.l.b16 %v559
        %v771 = vunpack.c.h.b16 %v559
        %v772 = vunpack.c.l.b16 %v560
        %v773 = vunpack.c.h.b16 %v560
        %v774 = vunpack.c.l.b16 %v561
        %v775 = vunpack.c.h.b16 %v561
        %v776 = vunpack.c.l.b16 %v562
        %v777 = vunpack.c.h.b16 %v562
        %v778 = vunpack.c.l.b16 %v563
        %v779 = vunpack.c.h.b16 %v563
        %v780 = vunpack.c.l.b16 %v564
        %v781 = vunpack.c.h.b16 %v564
        %v782 = vunpack.c.l.b16 %v565
        %v783 = vunpack.c.h.b16 %v565
        %v784 = vunpack.c.l.b16 %v566
        %v785 = vunpack.c.h.b16 %v566
        %v786 = vunpack.c.l.b16 %v567
        %v787 = vunpack.c.h.b16 %v567
        %v788 = vunpack.c.l.b16 %v568
        %v789 = vunpack.c.h.b16 %v568
        %v790 = vunpack.c.l.b16 %v569
        %v791 = vunpack.c.h.b16 %v569
        %v792 = vunpack.c.l.b16 %v570
        %v793 = vunpack.c.h.b16 %v570
        %v794 = vunpack.c.l.b16 %v571
        %v795 = vunpack.c.h.b16 %v571
        %v796 = vunpack.c.l.b16 %v572
        %v797 = vunpack.c.h.b16 %v572
        %v798 = vunpack.c.l.b16 %v573
        %v799 = vunpack.c.h.b16 %v573
        %v800 = vunpack.c.l.b16 %v574
        %v801 = vunpack.c.h.b16 %v574
        %v802 = vunpack.c.l.b16 %v575
        %v803 = vunpack.c.h.b16 %v575
        %v804 = vunpack.c.l.b16 %v576
        %v805 = vunpack.c.h.b16 %v576
        %v806 = vunpack.c.l.b16 %v577
        %v807 = vunpack.c.h.b16 %v577
        %v808 = vunpack.c.l.b16 %v578
        %v809 = vunpack.c.h.b16 %v578
        %v810 = vunpack.c.l.b16 %v579
        %v811 = vunpack.c.h.b16 %v579
        %v812 = vunpack.c.l.b16 %v580
        %v813 = vunpack.c.h.b16 %v580
        %v814 = vunpack.c.l.b16 %v581
        %v815 = vunpack.c.h.b16 %v581
        %v816 = vpack.c.b16 %v696, %v688
        %v817 = vpack.c.b16 %v697, %v689
        %v818 = vpack.c.b16 %v698, %v690
        %v819 = vpack.c.b16 %v699, %v691
        %v820 = vpack.c.b16 %v700, %v692
        %v821 = vpack.c.b16 %v701, %v693
        %v822 = vpack.c.b16 %v702, %v694
        %v823 = vpack.c.b16 %v703, %v695
        %v824 = vpack.c.b16 %v712, %v704
        %v825 = vpack.c.b16 %v713, %v705
        %v826 = vpack.c.b16 %v714, %v706
        %v827 = vpack.c.b16 %v715, %v707
        %v828 = vpack.c.b16 %v716, %v708
        %v829 = vpack.c.b16 %v717, %v709
        %v830 = vpack.c.b16 %v718, %v710
        %v831 = vpack.c.b16 %v719, %v711
        %v832 = vpack.c.b16 %v728, %v720
        %v833 = vpack.c.b16 %v729, %v721
        %v834 = vpack.c.b16 %v730, %v722
        %v835 = vpack.c.b16 %v731, %v723
        %v836 = vpack.c.b16 %v732, %v724
        %v837 = vpack.c.b16 %v733, %v725
        %v838 = vpack.c.b16 %v734, %v726
        %v839 = vpack.c.b16 %v735, %v727
        %v840 = vpack.c.b16 %v744, %v736
        %v841 = vpack.c.b16 %v745, %v737
        %v842 = vpack.c.b16 %v746, %v738
        %v843 = vpack.c.b16 %v747, %v739
        %v844 = vpack.c.b16 %v748, %v740
        %v845 = vpack.c.b16 %v749, %v741
        %v846 = vpack.c.b16 %v750, %v742
        %v847 = vpack.c.b16 %v751, %v743
        %v848 = vpack.c.b16 %v760, %v752
        %v849 = vpack.c.b16 %v761, %v753
        %v850 = vpack.c.b16 %v762, %v754
        %v851 = vpack.c.b16 %v763, %v755
        %v852 = vpack.c.b16 %v764, %v756
        %v853 = vpack.c.b16 %v765, %v757
        %v854 = vpack.c.b16 %v766, %v758
        %v855 = vpack.c.b16 %v767, %v759
        %v856 = vpack.c.b16 %v776, %v768
        %v857 = vpack.c.b16 %v777, %v769
        %v858 = vpack.c.b16 %v778, %v770
        %v859 = vpack.c.b16 %v779, %v771
        %v860 = vpack.c.b16 %v780, %v772
        %v861 = vpack.c.b16 %v781, %v773
        %v862 = vpack.c.b16 %v782, %v774
        %v863 = vpack.c.b16 %v783, %v775
        %v864 = vpack.c.b16 %v792, %v784
        %v865 = vpack.c.b16 %v793, %v785
        %v866 = vpack.c.b16 %v794, %v786
        %v867 = vpack.c.b16 %v795, %v787
        %v868 = vpack.c.b16 %v796, %v788
        %v869 = vpack.c.b16 %v797, %v789
        %v870 = vpack.c.b16 %v798, %v790
        %v871 = vpack.c.b16 %v799, %v791
        %v872 = vpack.c.b16 %v808, %v800
        %v873 = vpack.c.b16 %v809, %v801
        %v874 = vpack.c.b16 %v810, %v802
        %v875 = vpack.c.b16 %v811, %v803
        %v876 = vpack.c.b16 %v812, %v804
        %v877 = vpack.c.b16 %v813, %v805
        %v878 = vpack.c.b16 %v814, %v806
        %v879 = vpack.c.b16 %v815, %v807
        %944 = vmatprep.subr.bf16.mxu0 %v817
        %945 = vmatpush1.bf16.msra.mxu0 %v816
        %946 = vmatprep.subr.bf16.mxu0 %v825
        %947 = vmatpush1.bf16.msra.mxu0 %v824
        %948 = vmatprep.subr.bf16.mxu0 %v833
        %949 = vmatpush1.bf16.msra.mxu0 %v832
        %950 = vmatprep.subr.bf16.mxu0 %v841
        %951 = vmatpush1.bf16.msra.mxu0 %v840
        %952 = vmatprep.subr.bf16.mxu0 %v849
        %953 = vmatpush1.bf16.msra.mxu0 %v848
        %954 = vmatprep.subr.bf16.mxu0 %v857
        %955 = vmatpush1.bf16.msra.mxu0 %v856
        %956 = vmatprep.subr.bf16.mxu0 %v865
        %957 = vmatpush1.bf16.msra.mxu0 %v864
        %958 = vmatprep.subr.bf16.mxu0 %v873
        %959 = vmatpush1.bf16.msra.mxu0 %v872
        %960 = vmatprep.subr.bf16.mxu0 0
        %961 = vmatpush1.bf16.msra.mxu0 0
        %962 = vmatprep.subr.bf16.mxu0 0
        %963 = vmatpush1.bf16.msra.mxu0 0
        %964 = vmatprep.subr.bf16.mxu0 0
        %965 = vmatpush1.bf16.msra.mxu0 0
        %966 = vmatprep.subr.bf16.mxu0 0
        %967 = vmatpush1.bf16.msra.mxu0 0
        %968 = vmatprep.subr.bf16.mxu0 0
        %969 = vmatpush1.bf16.msra.mxu0 0
        %970 = vmatprep.subr.bf16.mxu0 0
        %971 = vmatpush1.bf16.msra.mxu0 0
        %972 = vmatprep.subr.bf16.mxu0 0
        %973 = vmatpush1.bf16.msra.mxu0 0
        %974 = vmatprep.subr.bf16.mxu0 0
        %975 = vmatpush1.bf16.msra.mxu0 0
        %976 = vmatprep.mubr.bf16.mxu0 0
        %977 = vmatmul.mubr.bf16.gmra.mrb[0].mxu0 %v517
        %v978 = vpop.f32.mrb[0].mxu0
        %v979 = vadd.f32 %v587, %v978
        %v980 = vpop.f32.mrb[0].mxu0
        %v981 = vadd.f32 %v591, %v980
        %v982 = vpop.f32.mrb[0].mxu0
        %v983 = vadd.f32 %v587, %v982
        %v984 = vpop.f32.mrb[0].mxu0
        %v985 = vadd.f32 %v591, %v984
        %986 = vdwg.mxu0
        %987 = vmatprep.subr.bf16.mxu0 %v819
        %988 = vmatpush1.bf16.msra.mxu0 %v818
        %989 = vmatprep.subr.bf16.mxu0 %v827
        %990 = vmatpush1.bf16.msra.mxu0 %v826
        %991 = vmatprep.subr.bf16.mxu0 %v835
        %992 = vmatpush1.bf16.msra.mxu0 %v834
        %993 = vmatprep.subr.bf16.mxu0 %v843
        %994 = vmatpush1.bf16.msra.mxu0 %v842
        %995 = vmatprep.subr.bf16.mxu0 %v851
        %996 = vmatpush1.bf16.msra.mxu0 %v850
        %997 = vmatprep.subr.bf16.mxu0 %v859
        %998 = vmatpush1.bf16.msra.mxu0 %v858
        %999 = vmatprep.subr.bf16.mxu0 %v867
        %1000 = vmatpush1.bf16.msra.mxu0 %v866
        %1001 = vmatprep.subr.bf16.mxu0 %v875
        %1002 = vmatpush1.bf16.msra.mxu0 %v874
        %1003 = vmatprep.subr.bf16.mxu0 0
        %1004 = vmatpush1.bf16.msra.mxu0 0
        %1005 = vmatprep.subr.bf16.mxu0 0
        %1006 = vmatpush1.bf16.msra.mxu0 0
        %1007 = vmatprep.subr.bf16.mxu0 0
        %1008 = vmatpush1.bf16.msra.mxu0 0
        %1009 = vmatprep.subr.bf16.mxu0 0
        %1010 = vmatpush1.bf16.msra.mxu0 0
        %1011 = vmatprep.subr.bf16.mxu0 0
        %1012 = vmatpush1.bf16.msra.mxu0 0
        %1013 = vmatprep.subr.bf16.mxu0 0
        %1014 = vmatpush1.bf16.msra.mxu0 0
        %1015 = vmatprep.subr.bf16.mxu0 0
        %1016 = vmatpush1.bf16.msra.mxu0 0
        %1017 = vmatprep.subr.bf16.mxu0 0
        %1018 = vmatpush1.bf16.msra.mxu0 0
        %1019 = vmatprep.mubr.bf16.mxu0 0
        %1020 = vmatmul.mubr.bf16.gmra.mrb[0].mxu0 %v517
        %v1021 = vpop.f32.mrb[0].mxu0
        %v1022 = vadd.f32 %v595, %v1021
        %v1023 = vpop.f32.mrb[0].mxu0
        %v1024 = vadd.f32 %v599, %v1023
        %v1025 = vpop.f32.mrb[0].mxu0
        %v1026 = vadd.f32 %v595, %v1025
        %v1027 = vpop.f32.mrb[0].mxu0
        %v1028 = vadd.f32 %v599, %v1027
        %1029 = vdwg.mxu0
        %1030 = vmatprep.subr.bf16.mxu0 %v821
        %1031 = vmatpush1.bf16.msra.mxu0 %v820
        %1032 = vmatprep.subr.bf16.mxu0 %v829
        %1033 = vmatpush1.bf16.msra.mxu0 %v828
        %1034 = vmatprep.subr.bf16.mxu0 %v837
        %1035 = vmatpush1.bf16.msra.mxu0 %v836
        %1036 = vmatprep.subr.bf16.mxu0 %v845
        %1037 = vmatpush1.bf16.msra.mxu0 %v844
        %1038 = vmatprep.subr.bf16.mxu0 %v853
        %1039 = vmatpush1.bf16.msra.mxu0 %v852
        %1040 = vmatprep.subr.bf16.mxu0 %v861
        %1041 = vmatpush1.bf16.msra.mxu0 %v860
        %1042 = vmatprep.subr.bf16.mxu0 %v869
        %1043 = vmatpush1.bf16.msra.mxu0 %v868
        %1044 = vmatprep.subr.bf16.mxu0 %v877
        %1045 = vmatpush1.bf16.msra.mxu0 %v876
        %1046 = vmatprep.subr.bf16.mxu0 0
        %1047 = vmatpush1.bf16.msra.mxu0 0
        %1048 = vmatprep.subr.bf16.mxu0 0
        %1049 = vmatpush1.bf16.msra.mxu0 0
        %1050 = vmatprep.subr.bf16.mxu0 0
        %1051 = vmatpush1.bf16.msra.mxu0 0
        %1052 = vmatprep.subr.bf16.mxu0 0
        %1053 = vmatpush1.bf16.msra.mxu0 0
        %1054 = vmatprep.subr.bf16.mxu0 0
        %1055 = vmatpush1.bf16.msra.mxu0 0
        %1056 = vmatprep.subr.bf16.mxu0 0
        %1057 = vmatpush1.bf16.msra.mxu0 0
        %1058 = vmatprep.subr.bf16.mxu0 0
        %1059 = vmatpush1.bf16.msra.mxu0 0
        %1060 = vmatprep.subr.bf16.mxu0 0
        %1061 = vmatpush1.bf16.msra.mxu0 0
        %1062 = vmatprep.mubr.bf16.mxu0 0
        %1063 = vmatmul.mubr.bf16.gmra.mrb[0].mxu0 %v517
        %v1064 = vpop.f32.mrb[0].mxu0
        %v1065 = vadd.f32 %v603, %v1064
        %v1066 = vpop.f32.mrb[0].mxu0
        %v1067 = vadd.f32 %v607, %v1066
        %v1068 = vpop.f32.mrb[0].mxu0
        %v1069 = vadd.f32 %v603, %v1068
        %v1070 = vpop.f32.mrb[0].mxu0
        %v1071 = vadd.f32 %v607, %v1070
        %1072 = vdwg.mxu0
        %1073 = vmatprep.subr.bf16.mxu0 %v823
        %1074 = vmatpush1.bf16.msra.mxu0 %v822
        %1075 = vmatprep.subr.bf16.mxu0 %v831
        %1076 = vmatpush1.bf16.msra.mxu0 %v830
        %1077 = vmatprep.subr.bf16.mxu0 %v839
        %1078 = vmatpush1.bf16.msra.mxu0 %v838
        %1079 = vmatprep.subr.bf16.mxu0 %v847
        %1080 = vmatpush1.bf16.msra.mxu0 %v846
        %1081 = vmatprep.subr.bf16.mxu0 %v855
        %1082 = vmatpush1.bf16.msra.mxu0 %v854
        %1083 = vmatprep.subr.bf16.mxu0 %v863
        %1084 = vmatpush1.bf16.msra.mxu0 %v862
        %1085 = vmatprep.subr.bf16.mxu0 %v871
        %1086 = vmatpush1.bf16.msra.mxu0 %v870
        %1087 = vmatprep.subr.bf16.mxu0 %v879
        %1088 = vmatpush1.bf16.msra.mxu0 %v878
        %1089 = vmatprep.subr.bf16.mxu0 0
        %1090 = vmatpush1.bf16.msra.mxu0 0
        %1091 = vmatprep.subr.bf16.mxu0 0
        %1092 = vmatpush1.bf16.msra.mxu0 0
        %1093 = vmatprep.subr.bf16.mxu0 0
        %1094 = vmatpush1.bf16.msra.mxu0 0
        %1095 = vmatprep.subr.bf16.mxu0 0
        %1096 = vmatpush1.bf16.msra.mxu0 0
        %1097 = vmatprep.subr.bf16.mxu0 0
        %1098 = vmatpush1.bf16.msra.mxu0 0
        %1099 = vmatprep.subr.bf16.mxu0 0
        %1100 = vmatpush1.bf16.msra.mxu0 0
        %1101 = vmatprep.subr.bf16.mxu0 0
        %1102 = vmatpush1.bf16.msra.mxu0 0
        %1103 = vmatprep.subr.bf16.mxu0 0
        %1104 = vmatpush1.bf16.msra.mxu0 0
        %1105 = vmatprep.mubr.bf16.mxu0 0
        %1106 = vmatmul.mubr.bf16.gmra.mrb[0].mxu0 %v517
        %v1107 = vpop.f32.mrb[0].mxu0
        %v1108 = vadd.f32 %v611, %v1107
        %v1109 = vpop.f32.mrb[0].mxu0
        %v1110 = vadd.f32 %v615, %v1109
        %v1111 = vpop.f32.mrb[0].mxu0
        %v1112 = vadd.f32 %v611, %v1111
        %v1113 = vpop.f32.mrb[0].mxu0
        %v1114 = vadd.f32 %v615, %v1113
        %1115 = vdwg.mxu0
        %v1116 = vmax.f32 %v979, 0.0
        %v1117 = vmax.f32 %v981, 0.0
        %v1118 = vmax.f32 %v1022, 0.0
        %v1119 = vmax.f32 %v1024, 0.0
        %v1120 = vmax.f32 %v1065, 0.0
        %v1121 = vmax.f32 %v1067, 0.0
        %v1122 = vmax.f32 %v1108, 0.0
        %v1123 = vmax.f32 %v1110, 0.0
        %v1124 = vmax.f32 %v983, 0.0
        %v1125 = vmax.f32 %v985, 0.0
        %v1126 = vmax.f32 %v1026, 0.0
        %v1127 = vmax.f32 %v1028, 0.0
        %v1128 = vmax.f32 %v1069, 0.0
        %v1129 = vmax.f32 %v1071, 0.0
        %v1130 = vmax.f32 %v1112, 0.0
        %v1131 = vmax.f32 %v1114, 0.0
        %v1132 = vmax.f32 %v1116, %v1124
        %v1133 = vrot.slane %v1132, 4
        %v1134 = vmax.f32 %v1132, %v1133
        %v1135 = vrot.slane %v1134, 2
        %v1136 = vmax.f32 %v1134, %v1135
        %v1137 = vrot.slane %v1136, 1
        %v1138 = vmax.f32 %v1136, %v1137
        %v1139 = vmax.f32 %v1117, %v1125
        %v1140 = vrot.slane %v1139, 4
        %v1141 = vmax.f32 %v1139, %v1140
        %v1142 = vrot.slane %v1141, 2
        %v1143 = vmax.f32 %v1141, %v1142
        %v1144 = vrot.slane %v1143, 1
        %v1145 = vmax.f32 %v1143, %v1144
        %v1146 = vmax.f32 %v1118, %v1126
        %v1147 = vrot.slane %v1146, 4
        %v1148 = vmax.f32 %v1146, %v1147
        %v1149 = vrot.slane %v1148, 2
        %v1150 = vmax.f32 %v1148, %v1149
        %v1151 = vrot.slane %v1150, 1
        %v1152 = vmax.f32 %v1150, %v1151
        %v1153 = vmax.f32 %v1119, %v1127
        %v1154 = vrot.slane %v1153, 4
        %v1155 = vmax.f32 %v1153, %v1154
        %v1156 = vrot.slane %v1155, 2
        %v1157 = vmax.f32 %v1155, %v1156
        %v1158 = vrot.slane %v1157, 1
        %v1159 = vmax.f32 %v1157, %v1158
        %v1160 = vmax.f32 %v1120, %v1128
        %v1161 = vrot.slane %v1160, 4
        %v1162 = vmax.f32 %v1160, %v1161
        %v1163 = vrot.slane %v1162, 2
        %v1164 = vmax.f32 %v1162, %v1163
        %v1165 = vrot.slane %v1164, 1
        %v1166 = vmax.f32 %v1164, %v1165
        %v1167 = vmax.f32 %v1121, %v1129
        %v1168 = vrot.slane %v1167, 4
        %v1169 = vmax.f32 %v1167, %v1168
        %v1170 = vrot.slane %v1169, 2
        %v1171 = vmax.f32 %v1169, %v1170
        %v1172 = vrot.slane %v1171, 1
        %v1173 = vmax.f32 %v1171, %v1172
        %v1174 = vmax.f32 %v1122, %v1130
        %v1175 = vrot.slane %v1174, 4
        %v1176 = vmax.f32 %v1174, %v1175
        %v1177 = vrot.slane %v1176, 2
        %v1178 = vmax.f32 %v1176, %v1177
        %v1179 = vrot.slane %v1178, 1
        %v1180 = vmax.f32 %v1178, %v1179
        %v1181 = vmax.f32 %v1123, %v1131
        %v1182 = vrot.slane %v1181, 4
        %v1183 = vmax.f32 %v1181, %v1182
        %v1184 = vrot.slane %v1183, 2
        %v1185 = vmax.f32 %v1183, %v1184
        %v1186 = vrot.slane %v1185, 1
        %v1187 = vmax.f32 %v1185, %v1186
        %p1188 = scmp.eq.s32.totalorder %s28, 0
        // Predicated region
        $region57: #{tpu_custom_call.1} parent=47 // pred_check
          %p1189 = pneg %p1188
        $region58: #{tpu_custom_call.1} parent=47 // pred_check_branch
          %1191 = sbr.rel (%p1189) target = $region60
        $region59: #{tpu_custom_call.1} parent=47 // pred_region
          %v1200 = vcombine.low %v1138, %v1145
          %v1201 = vcombine.low %v1152, %v1159
          %v1202 = vcombine.low %v1166, %v1173
          %v1203 = vcombine.low %v1180, %v1187
          %v1205 = vunpack.c.l.s4 1966171168
          %v1206 = vunpack.c.0.s8 %v1205
          %v1207 = vlaneseq
          %v1208 = vshrl.u32 %v1207, 7
          %v1209 = vsub.s32 %v1206, %v1208
          %v1210 = vrot.slane %v1200, %v1209
          %v1212 = vunpack.c.l.s4 1966171168
          %v1213 = vunpack.c.0.s8 %v1212
          %v1214 = vlaneseq
          %v1215 = vshrl.u32 %v1214, 7
          %v1216 = vsub.s32 %v1213, %v1215
          %v1217 = vrot.slane %v1201, %v1216
          %v1219 = vunpack.c.l.s4 1966171168
          %v1220 = vunpack.c.0.s8 %v1219
          %v1221 = vlaneseq
          %v1222 = vshrl.u32 %v1221, 7
          %v1223 = vsub.s32 %v1220, %v1222
          %v1224 = vrot.slane %v1202, %v1223
          %v1226 = vunpack.c.l.s4 1966171168
          %v1227 = vunpack.c.0.s8 %v1226
          %v1228 = vlaneseq
          %v1229 = vshrl.u32 %v1228, 7
          %v1230 = vsub.s32 %v1227, %v1229
          %v1231 = vrot.slane %v1203, %v1230
          %v1232 = vcombine.low %v1210, %v1217
          %v1233 = vcombine.low %v1224, %v1231
          %v1235 = vunpack.c.l.s4 1966171168
          %v1236 = vunpack.c.0.s8 %v1235
          %v1237 = vlaneseq
          %v1238 = vshrl.u32 %v1237, 7
          %v1239 = vsub.s32 %v1236, %v1238
          %v1240 = vrot.slane %v1232, %v1239
          %v1242 = vunpack.c.l.s4 1966171168
          %v1243 = vunpack.c.0.s8 %v1242
          %v1244 = vlaneseq
          %v1245 = vshrl.u32 %v1244, 7
          %v1246 = vsub.s32 %v1243, %v1245
          %v1247 = vrot.slane %v1233, %v1246
          %v1248 = vcombine.low %v1240, %v1247
          %1250 = vst [vmem:[%s324] sm:$0xff] %v1248
        $region60: #{tpu_custom_call.1} parent=47 // pred_fallthru
          _
        %p1251 = scmp.gt.s32.totalorder %s28, 0
        // Predicated region
        $region61: #{tpu_custom_call.1} parent=47 // pred_check
          %p1252 = pneg %p1251
        $region62: #{tpu_custom_call.1} parent=47 // pred_check_branch
          %1254 = sbr.rel (%p1252) target = $region64
        $region63: #{tpu_custom_call.1} parent=47 // pred_region
          %v1255 = vld [vmem:[%s324] sm:$0xff]
          %v1264 = vcombine.low %v1138, %v1145
          %v1265 = vcombine.low %v1152, %v1159
          %v1266 = vcombine.low %v1166, %v1173
          %v1267 = vcombine.low %v1180, %v1187
          %v1269 = vunpack.c.l.s4 1966171168
          %v1270 = vunpack.c.0.s8 %v1269
          %v1271 = vlaneseq
          %v1272 = vshrl.u32 %v1271, 7
          %v1273 = vsub.s32 %v1270, %v1272
          %v1274 = vrot.slane %v1264, %v1273
          %v1276 = vunpack.c.l.s4 1966171168
          %v1277 = vunpack.c.0.s8 %v1276
          %v1278 = vlaneseq
          %v1279 = vshrl.u32 %v1278, 7
          %v1280 = vsub.s32 %v1277, %v1279
          %v1281 = vrot.slane %v1265, %v1280
          %v1283 = vunpack.c.l.s4 1966171168
          %v1284 = vunpack.c.0.s8 %v1283
          %v1285 = vlaneseq
          %v1286 = vshrl.u32 %v1285, 7
          %v1287 = vsub.s32 %v1284, %v1286
          %v1288 = vrot.slane %v1266, %v1287
          %v1290 = vunpack.c.l.s4 1966171168
          %v1291 = vunpack.c.0.s8 %v1290
          %v1292 = vlaneseq
          %v1293 = vshrl.u32 %v1292, 7
          %v1294 = vsub.s32 %v1291, %v1293
          %v1295 = vrot.slane %v1267, %v1294
          %v1296 = vcombine.low %v1274, %v1281
          %v1297 = vcombine.low %v1288, %v1295
          %v1299 = vunpack.c.l.s4 1966171168
          %v1300 = vunpack.c.0.s8 %v1299
          %v1301 = vlaneseq
          %v1302 = vshrl.u32 %v1301, 7
          %v1303 = vsub.s32 %v1300, %v1302
          %v1304 = vrot.slane %v1296, %v1303
          %v1306 = vunpack.c.l.s4 1966171168
          %v1307 = vunpack.c.0.s8 %v1306
          %v1308 = vlaneseq
          %v1309 = vshrl.u32 %v1308, 7
          %v1310 = vsub.s32 %v1307, %v1309
          %v1311 = vrot.slane %v1297, %v1310
          %v1312 = vcombine.low %v1304, %v1311
          %v1314 = vmax.f32 %v1255, %v1312
          %1315 = vst [vmem:[%s324] sm:$0xff] %v1314
        $region64: #{tpu_custom_call.1} parent=47 // pred_fallthru
          _
        %s1316 = sand.u32 %s197, 1
        %s1317 = scalar_lea.sflag [#allocation4], %s1316
        %s1318 = sand.u32 %s197, 1
        %s1319 = smul.addr %s1318, 8
        %s1320 = scalar_lea.vmem [#allocation7], %s1319
        // Predicated region
        $region65: #{tpu_custom_call.1} parent=47 // pred_check
          %p1321 = pneg %p207
        $region66: #{tpu_custom_call.1} parent=47 // pred_check_branch
          %1323 = sbr.rel (%p1321) target = $region68
        $region67: #{tpu_custom_call.1} parent=47 // pred_region
          %s1325 = ssub.s32 128, 128
          %1326 = vsyncadd %s1317, %s1325
          %s1327 = smul.addr %s27, 8
          %s1328 = smul.addr %s1327, 16
          %s1329 = scalar_lea.hbm %s7, %s1328
          %s1331 = sshll.u32 %s1320, 4
          %s1332 = int_to_ptr.vmem [resolvable:$true] %s1331
          %1334 = dma.vmem_to_hbm [thread:$0]  %s1332, 128, %s1329, %s1317
        $region68: #{tpu_custom_call.1} parent=47 // pred_fallthru
          _
      $region48: #{tpu_custom_call.1} parent=5 // pred_fallthru
        _
      %p1335 = scmp.le.s32.totalorder 2, %s18
      // Predicated region
      $region69: #{tpu_custom_call.1} parent=5 // pred_check
        %p1336 = pneg %p1335
      $region70: #{tpu_custom_call.1} parent=5 // pred_check_branch
        %1338 = sbr.rel (%p1336) target = $region72
      $region71: #{tpu_custom_call.1} parent=5 // pred_region
        %s1339 = ssub.s32 %s18, 2
        // Predicated region
        $region73: #{tpu_custom_call.1} parent=71 // pred_check
          %p1340 = pneg %p213
        $region74: #{tpu_custom_call.1} parent=71 // pred_check_branch
          %1342 = sbr.rel (%p1340) target = $region76
        $region75: #{tpu_custom_call.1} parent=71 // pred_region
          %s1343 = sand.u32 %s198, 1
          %s1344 = scalar_lea.sflag [#allocation4], %s1343
          %s1345 = sand.u32 %s198, 1
          %s1346 = smul.addr %s1345, 8
          %s1347 = scalar_lea.vmem [#allocation7], %s1346
          %1348 = dma.done %s1344, 128
        $region76: #{tpu_custom_call.1} parent=71 // pred_fallthru
          _
      $region72: #{tpu_custom_call.1} parent=5 // pred_fallthru
        _
    $region6: #{tpu_custom_call.1} parent=1 // loop_footer
      %s22 = sadd.s32 1, %s18
    $region7: #{tpu_custom_call.1} parent=1 // loop_footer_branch
      %17 = sbr.rel target = $region3
    $region8: #{tpu_custom_call.1} parent=1 // loop_exit
      _
    %1349 = vsyncpa [#allocation3], 1
    %s1350 = scalar_lea.sflag [#allocation3], 1
    %1351 = vsyncpa %s1350, 1
    %1352 = vsyncpa [#allocation6], 1
    %1353 = vsyncpa [#allocation4], 1
    %s1354 = scalar_lea.sflag [#allocation4], 1
    %1355 = vsyncpa %s1354, 1

</llo_original>
